<compile_context>
chip_gen: v6e
topology: v6e:2x2x1
jax: 0.10.0
libtpu: 0.0.40
codegen_flags: <defaults>
</compile_context>

<pallas_src>
import jax
import jax.numpy as jnp
from jax.experimental import pallas as pl
from jax.experimental.pallas import tpu as pltpu


def _logsigmoid(x):
    # Numerically stable log(sigmoid(x)) = min(x, 0) - log1p(exp(-|x|))
    return jnp.minimum(x, 0.0) - jnp.log1p(jnp.exp(-jnp.abs(x)))


def _round_up(x, m):
    return ((x + m - 1) // m) * m


def skipgram_loss_kernel(eu_ref, ev_ref, nvs_ref, loss_ref):
    """Per-row SkipGram negative-sampling loss for one batch tile.

    eu_ref:  (TB, Ep) bf16/f32  u_embeddings(focus) tile
    ev_ref:  (TB, Ep) bf16/f32  v_embeddings(pos_context) tile
    nvs_ref: (TB, Ep) bf16/f32  sum_k v_embeddings(neg_context_k) tile
    loss_ref:(TB, 1)  f32       per-row loss = logsig(pos) + logsig(-neg)
    """
    eu = eu_ref[...].astype(jnp.float32)     # (TB, Ep)
    ev = ev_ref[...].astype(jnp.float32)     # (TB, Ep)
    nvs = nvs_ref[...].astype(jnp.float32)   # (TB, Ep)

    # score = sum(embed_u * embed_v, dim=1)
    pos_score = jnp.sum(eu * ev, axis=1, keepdims=True)      # (TB, 1)
    # neg_score = sum_k <neg_embed_v_k, embed_u> = <sum_k neg_embed_v_k, embed_u>
    neg_score = jnp.sum(nvs * eu, axis=1, keepdims=True)     # (TB, 1)

    loss_ref[...] = _logsigmoid(pos_score) + _logsigmoid(-neg_score)


def skipgram_forward(u_weight, v_weight, focus, pos_context, neg_context,
                     batch_size, *, stream_dtype=jnp.bfloat16,
                     max_tile_b=2048):
    """Equivalent of SkipGram.forward; returns the scalar loss."""
    b = focus.shape[0]
    e = u_weight.shape[1]

    # Batch tiling: sublane-aligned tile; pad the batch (with index-0 rows,
    # discarded by the [:b] slice after the kernel) so the grid divides.
    tile_b = _round_up(b, 8) if b <= max_tile_b else max_tile_b
    padded_b = _round_up(b, tile_b)
    pad_b = padded_b - b
    if pad_b:
        focus = jnp.pad(focus, (0, pad_b))
        pos_context = jnp.pad(pos_context, (0, pad_b))
        neg_context = jnp.pad(neg_context, ((0, pad_b), (0, 0)))

    # Embedding row gathers + pre-reduction over the K negatives (XLA glue).
    # TODO(synk): fuse these gathers into the kernel (scalar-prefetched ids +
    # VMEM-resident tables or manual row DMAs) to drop the extra HBM
    # round-trip of the gathered activations.
    embed_u = jnp.take(u_weight, focus, axis=0).astype(stream_dtype)        # (Bp, E)
    embed_v = jnp.take(v_weight, pos_context, axis=0).astype(stream_dtype)  # (Bp, E)
    neg_sum = jnp.sum(jnp.take(v_weight, neg_context, axis=0),
                      axis=1).astype(stream_dtype)                          # (Bp, E)

    # Lane-pad E to a multiple of 128 (zeros don't change the dot products).
    ep = _round_up(e, 128)
    if ep != e:
        lane_pad = ((0, 0), (0, ep - e))
        embed_u = jnp.pad(embed_u, lane_pad)
        embed_v = jnp.pad(embed_v, lane_pad)
        neg_sum = jnp.pad(neg_sum, lane_pad)

    row_loss = pl.pallas_call(
        skipgram_loss_kernel,
        out_shape=jax.ShapeDtypeStruct((padded_b, 1), jnp.float32),
        grid_spec=pltpu.PrefetchScalarGridSpec(
            num_scalar_prefetch=0,
            grid=(padded_b // tile_b,),
            in_specs=[
                pl.BlockSpec((tile_b, ep), lambda i: (i, 0)),
                pl.BlockSpec((tile_b, ep), lambda i: (i, 0)),
                pl.BlockSpec((tile_b, ep), lambda i: (i, 0)),
            ],
            out_specs=pl.BlockSpec((tile_b, 1), lambda i: (i, 0)),
        ),
        compiler_params=pltpu.CompilerParams(
            # Independent per-tile outputs: let megacore shard the batch axis
            # (2 TCs on v7x; harmless on v5e/v6e).
            dimension_semantics=("parallel",),
            # Above v5e's 16 MiB scoped default, far under v7x's 64 MiB.
            vmem_limit_bytes=32 * 1024 * 1024,
        ),
    )(embed_u, embed_v, neg_sum)

    # Tiny final reduce in XLA; padded rows are sliced away.
    # return -1 * loss.sum() / batch_size
    return -jnp.sum(row_loss[:b, 0]) / batch_size


def skipgram_forward_ref(u_weight, v_weight, focus, pos_context, neg_context,
                         batch_size):
    """Pure-JAX f32 reference (mirrors the PyTorch forward exactly)."""
    embed_u = u_weight[focus]
    embed_v = v_weight[pos_context]
    score = jnp.sum(embed_u * embed_v, axis=1)
    log_target = jax.nn.log_sigmoid(score)
    neg_embed_v = v_weight[neg_context]                       # (B, K, E)
    neg_score = jnp.einsum("bke,be->bk", neg_embed_v, embed_u)
    neg_score = jnp.sum(neg_score, axis=1)
    sum_log_sampled = jax.nn.log_sigmoid(-neg_score)
    loss = log_target + sum_log_sampled
    return -jnp.sum(loss) / batch_size


if __name__ == "__main__":
    vocab_size = 64
    embedding_size = 128
    batch = 8
    num_neg = 5

    key = jax.random.PRNGKey(0)
    k_u, k_v, k_focus, k_pos, k_neg = jax.random.split(key, 5)

    focus = jax.random.randint(k_focus, (batch,), 0, vocab_size,
                               dtype=jnp.int32)
    pos_context = jax.random.randint(k_pos, (batch,), 0, vocab_size,
                                     dtype=jnp.int32)
    neg_context = jax.random.randint(k_neg, (batch, num_neg), 0, vocab_size,
                                     dtype=jnp.int32)

    # --- Test 1: parameters exactly as SkipGram.__init__ ------------------
    #   u_embeddings ~ U(-1/embedding_size, 1/embedding_size), v_embeddings = 0
    initrange = 1.0 / embedding_size
    u_weight = jax.random.uniform(k_u, (vocab_size, embedding_size),
                                  dtype=jnp.float32,
                                  minval=-initrange, maxval=initrange)
    v_weight = jnp.zeros((vocab_size, embedding_size), dtype=jnp.float32)

    loss1 = jax.block_until_ready(
        skipgram_forward(u_weight, v_weight, focus, pos_context, neg_context,
                         batch))
    ref1 = skipgram_forward_ref(u_weight, v_weight, focus, pos_context,
                                neg_context, batch)
    assert jnp.allclose(loss1, ref1, atol=1e-5, rtol=1e-5), (loss1, ref1)

    # --- Test 2: random weights, f32 streaming (tight parity) -------------
    u_weight2 = u_weight * (0.5 / initrange)
    v_weight2 = jax.random.uniform(k_v, (vocab_size, embedding_size),
                                   dtype=jnp.float32, minval=-0.5, maxval=0.5)
    ref2 = skipgram_forward_ref(u_weight2, v_weight2, focus, pos_context,
                                neg_context, batch)
    loss2_f32 = jax.block_until_ready(
        skipgram_forward(u_weight2, v_weight2, focus, pos_context, neg_context,
                         batch, stream_dtype=jnp.float32))
    assert jnp.allclose(loss2_f32, ref2, atol=1e-4, rtol=1e-4), (loss2_f32,
                                                                 ref2)

    # --- Test 3: default bf16 streaming (documented precision trade-off) --
    loss2_bf16 = jax.block_until_ready(
        skipgram_forward(u_weight2, v_weight2, focus, pos_context, neg_context,
                         batch))
    assert jnp.allclose(loss2_bf16, ref2, atol=5e-2, rtol=5e-2), (loss2_bf16,
                                                                  ref2)

    print("KERNEL_OK")
</pallas_src>

<mosaic_0001>
module attributes {stable_mosaic.version = 11 : i64} {
  func.func @skipgram_loss_kernel(%arg0: i32, %arg1: memref<8x128xbf16, #tpu.memory_space<vmem>>, %arg2: memref<8x128xbf16, #tpu.memory_space<vmem>>, %arg3: memref<8x128xbf16, #tpu.memory_space<vmem>>, %arg4: memref<8x1xf32, #tpu.memory_space<vmem>>) attributes {dimension_semantics = [#tpu.dimension_semantics<parallel>], iteration_bounds = array<i64: 1>, scalar_prefetch = 0 : i64, scratch_operands = 0 : i64, tpu.core_type = #tpu.core_type<tc>, window_params = [{transform_indices = @transform_0, window_bounds = array<i64: 8, 128>}, {transform_indices = @transform_1, window_bounds = array<i64: 8, 128>}, {transform_indices = @transform_2, window_bounds = array<i64: 8, 128>}, {transform_indices = @transform_3, window_bounds = array<i64: 8, 1>}]} {
    %c0 = arith.constant 0 : index
    %c0_0 = arith.constant 0 : index
    %0 = vector.load %arg1[%c0, %c0_0] : memref<8x128xbf16, #tpu.memory_space<vmem>>, vector<8x128xbf16>
    %1 = arith.extf %0 : vector<8x128xbf16> to vector<8x128xf32>
    %c0_1 = arith.constant 0 : index
    %c0_2 = arith.constant 0 : index
    %2 = vector.load %arg2[%c0_1, %c0_2] : memref<8x128xbf16, #tpu.memory_space<vmem>>, vector<8x128xbf16>
    %3 = arith.extf %2 : vector<8x128xbf16> to vector<8x128xf32>
    %c0_3 = arith.constant 0 : index
    %c0_4 = arith.constant 0 : index
    %4 = vector.load %arg3[%c0_3, %c0_4] : memref<8x128xbf16, #tpu.memory_space<vmem>>, vector<8x128xbf16>
    %5 = arith.extf %4 : vector<8x128xbf16> to vector<8x128xf32>
    %6 = arith.mulf %1, %3 : vector<8x128xf32>
    %cst = arith.constant dense<0.000000e+00> : vector<8xf32>
    %7 = vector.multi_reduction <add>, %6, %cst [1] : vector<8x128xf32> to vector<8xf32>
    %8 = vector.shape_cast %7 : vector<8xf32> to vector<8x1xf32>
    %9 = arith.mulf %5, %1 : vector<8x128xf32>
    %cst_5 = arith.constant dense<0.000000e+00> : vector<8xf32>
    %10 = vector.multi_reduction <add>, %9, %cst_5 [1] : vector<8x128xf32> to vector<8xf32>
    %11 = vector.shape_cast %10 : vector<8xf32> to vector<8x1xf32>
    %cst_6 = arith.constant 0.000000e+00 : f32
    %12 = vector.broadcast %cst_6 : f32 to vector<8x1xf32>
    %13 = arith.minimumf %8, %12 : vector<8x1xf32>
    %14 = math.absf %8 : vector<8x1xf32>
    %cst_7 = arith.constant 0.000000e+00 : f32
    %15 = vector.broadcast %cst_7 : f32 to vector<8x1xf32>
    %16 = arith.subf %15, %14 : vector<8x1xf32>
    %17 = math.exp %16 : vector<8x1xf32>
    %18 = math.log1p %17 : vector<8x1xf32>
    %19 = arith.subf %13, %18 : vector<8x1xf32>
    %cst_8 = arith.constant 0.000000e+00 : f32
    %20 = vector.broadcast %cst_8 : f32 to vector<8x1xf32>
    %21 = arith.subf %20, %11 : vector<8x1xf32>
    %cst_9 = arith.constant 0.000000e+00 : f32
    %22 = vector.broadcast %cst_9 : f32 to vector<8x1xf32>
    %23 = arith.minimumf %21, %22 : vector<8x1xf32>
    %24 = math.absf %21 : vector<8x1xf32>
    %cst_10 = arith.constant 0.000000e+00 : f32
    %25 = vector.broadcast %cst_10 : f32 to vector<8x1xf32>
    %26 = arith.subf %25, %24 : vector<8x1xf32>
    %27 = math.exp %26 : vector<8x1xf32>
    %28 = math.log1p %27 : vector<8x1xf32>
    %29 = arith.subf %23, %28 : vector<8x1xf32>
    %30 = arith.addf %19, %29 : vector<8x1xf32>
    %c0_11 = arith.constant 0 : index
    %c0_12 = arith.constant 0 : index
    %31 = vector.load %arg4[%c0_11, %c0_12] : memref<8x1xf32, #tpu.memory_space<vmem>>, vector<8x1xf32>
    tpu.vector_store %arg4[%c0_11, %c0_12], %30 {strides = array<i32>} : memref<8x1xf32, #tpu.memory_space<vmem>>, vector<8x1xf32>,
    return
  }
  func.func @transform_0(%arg0: i32) -> (i32, i32) {
    %c0_i32 = arith.constant 0 : i32
    %c0_i32_0 = arith.constant 0 : i32
    return %arg0, %c0_i32 : i32, i32
  }
  func.func @transform_1(%arg0: i32) -> (i32, i32) {
    %c0_i32 = arith.constant 0 : i32
    %c0_i32_0 = arith.constant 0 : i32
    return %arg0, %c0_i32 : i32, i32
  }
  func.func @transform_2(%arg0: i32) -> (i32, i32) {
    %c0_i32 = arith.constant 0 : i32
    %c0_i32_0 = arith.constant 0 : i32
    return %arg0, %c0_i32 : i32, i32
  }
  func.func @transform_3(%arg0: i32) -> (i32, i32) {
    %c0_i32 = arith.constant 0 : i32
    %c0_i32_0 = arith.constant 0 : i32
    return %arg0, %c0_i32 : i32, i32
  }
}

</mosaic_0001>

<llo_original>
// kernel: tpu_custom_call.1
$region0: #{tpu_custom_call.1}
  #allocation0 [shape = 'u32[]', space=smem, size = 0x4, offset = 0x4, fixed_abs, tag = 'smem constant byte address 0x4 - core index']
  #allocation1 [shape = 'u32[144,128]{1,0:T(1,128)}', space=vmem, size = 0x12000, scoped, tag = 'internal scratch']
  %s0 = inlined_call_operand.hbm [shape: bf16[8,128], index: 0, kind: input, shape index: {}]
  %s1 = inlined_call_operand.hbm [shape: bf16[8,128], index: 1, kind: input, shape index: {}]
  %s2 = inlined_call_operand.hbm [shape: bf16[8,128], index: 2, kind: input, shape index: {}]
  %s3 = inlined_call_operand.vmem [shape: f32[8,1], index: 3, kind: output, shape index: {}]
  %s4 = sld [smem:[#allocation0]]
  $region34: #{tpu_custom_call.1} parent=0
    _
  %s6 = ssub.s32 1, %s4
  %s7 = scalar_select 0, %s6, %s4
  $region1: #{tpu_custom_call.1} parent=0
    #allocation2 [shape = 'u8[2048]{0}', space=vmem, size = 0x800, scoped, tag = 'input window, operand 0, single buffered']
    #allocation3 [shape = 's32[1]{0}', space=sflag, size = 0x4, scoped, tag = 'scoped memory for tpu_custom_call.1']
    #allocation4 [shape = 'u8[2048]{0}', space=vmem, size = 0x800, scoped, tag = 'input window, operand 1, single buffered']
    #allocation5 [shape = 's32[1]{0}', space=sflag, size = 0x4, scoped, tag = 'scoped memory for tpu_custom_call.1']
    #allocation6 [shape = 'u8[2048]{0}', space=vmem, size = 0x800, scoped, tag = 'input window, operand 2, single buffered']
    %8 = vsyncpa [#allocation3], 0
    %9 = vsyncpa [#allocation5], 0
    // Predicated region
    $region2: #{tpu_custom_call.1} parent=1 // pred_check
      _
    $region3: #{tpu_custom_call.1} parent=1 // pred_check_branch
      %11 = sbr.rel (0) target = $region5
    $region4: #{tpu_custom_call.1} parent=1 // pred_region
      %s13 = ssub.s32 64, 64
      %14 = vsyncadd [#allocation3], %s13
      %s16 = sshll.u32 [#allocation2], 4
      %s17 = int_to_ptr.vmem [resolvable:$true] %s16
      %19 = dma.hbm_to_vmem [thread:$0]  %s0, 64, %s17, [#allocation3]
    $region5: #{tpu_custom_call.1} parent=1 // pred_fallthru
      _
    // Predicated region
    $region6: #{tpu_custom_call.1} parent=1 // pred_check
      _
    $region7: #{tpu_custom_call.1} parent=1 // pred_check_branch
      %21 = sbr.rel (0) target = $region9
    $region8: #{tpu_custom_call.1} parent=1 // pred_region
      %s23 = ssub.s32 64, 64
      %24 = vsyncadd [#allocation5], %s23
      %s26 = sshll.u32 [#allocation4], 4
      %s27 = int_to_ptr.vmem [resolvable:$true] %s26
      %29 = dma.hbm_to_vmem [thread:$0]  %s1, 64, %s27, [#allocation5]
    $region9: #{tpu_custom_call.1} parent=1 // pred_fallthru
      _
    // Predicated region
    $region10: #{tpu_custom_call.1} parent=1 // pred_check
      _
    $region11: #{tpu_custom_call.1} parent=1 // pred_check_branch
      %31 = sbr.rel (0) target = $region13
    $region12: #{tpu_custom_call.1} parent=1 // pred_region
      %s33 = ssub.s32 64, 64
      %34 = vsyncadd [#allocation5], %s33
      %s36 = sshll.u32 [#allocation6], 4
      %s37 = int_to_ptr.vmem [resolvable:$true] %s36
      %39 = dma.hbm_to_vmem [thread:$0]  %s2, 64, %s37, [#allocation5]
    $region13: #{tpu_custom_call.1} parent=1 // pred_fallthru
      _
    // Predicated region
    $region14: #{tpu_custom_call.1} parent=1 // pred_check
      _
    $region15: #{tpu_custom_call.1} parent=1 // pred_check_branch
      %41 = sbr.rel (0) target = $region17
    $region16: #{tpu_custom_call.1} parent=1 // pred_region
      %42 = dma.done [#allocation3], 64
    $region17: #{tpu_custom_call.1} parent=1 // pred_fallthru
      _
    // Predicated region
    $region18: #{tpu_custom_call.1} parent=1 // pred_check
      _
    $region19: #{tpu_custom_call.1} parent=1 // pred_check_branch
      %44 = sbr.rel (0) target = $region21
    $region20: #{tpu_custom_call.1} parent=1 // pred_region
      %45 = dma.done [#allocation5], 64
    $region21: #{tpu_custom_call.1} parent=1 // pred_fallthru
      _
    // Predicated region
    $region22: #{tpu_custom_call.1} parent=1 // pred_check
      _
    $region23: #{tpu_custom_call.1} parent=1 // pred_check_branch
      %47 = sbr.rel (0) target = $region25
    $region24: #{tpu_custom_call.1} parent=1 // pred_region
      %48 = dma.done [#allocation5], 64
    $region25: #{tpu_custom_call.1} parent=1 // pred_fallthru
      _
    %v49 = vld [vmem:[#allocation2] sm:$0xf]
    %v50 = vunpack.c.l.bf16 %v49
    %v51 = vld [vmem:[#allocation4] sm:$0xf]
    %v52 = vunpack.c.l.bf16 %v51
    %v53 = vld [vmem:[#allocation6] sm:$0xf]
    %v54 = vunpack.c.l.bf16 %v53
    %v55 = vmul.f32 %v50, %v52
    %56 = vadd.xlane.f32.xlu0 %v55
    %v57 = vpop.xlane.xlu0 %56
    %v58 = vmul.f32 %v54, %v50
    %59 = vadd.xlane.f32.xlu0 %v58
    %v60 = vpop.xlane.xlu0 %59
    %v61 = vmin.f32 %v57, 0.0
    %v62 = vand.u32 2147483647, %v57
    %v63 = vsub.f32 0.0, %v62
    %v64 = vmul.f32 %v63, 1.442695
    %v65 = vpow.pop %v64
    %v66 = vadd.f32 %v65, 1.0
    %v67 = vlog2.pop %v66
    %v68 = vmul.f32 %v67, 0.6931472
    %v69 = vmul.f32 -0.5, %v65
    %v70 = vadd.f32 %v69, 1.0
    %v71 = vmul.f32 %v70, %v65
    %v72 = vand.u32 2147483647, %v65
    %vm73 = vcmp.lt.f32.partialorder %v72, 0.0004427343
    %v74 = vsel %vm73, %v71, %v68
    %v75 = vsub.f32 %v61, %v74
    %v76 = vsub.f32 0.0, %v60
    %v77 = vmin.f32 %v76, 0.0
    %v78 = vand.u32 2147483647, %v76
    %v79 = vsub.f32 0.0, %v78
    %v80 = vmul.f32 %v79, 1.442695
    %v81 = vpow.pop %v80
    %v82 = vadd.f32 %v81, 1.0
    %v83 = vlog2.pop %v82
    %v84 = vmul.f32 %v83, 0.6931472
    %v85 = vmul.f32 -0.5, %v81
    %v86 = vadd.f32 %v85, 1.0
    %v87 = vmul.f32 %v86, %v81
    %v88 = vand.u32 2147483647, %v81
    %vm89 = vcmp.lt.f32.partialorder %v88, 0.0004427343
    %v90 = vsel %vm89, %v87, %v84
    %v91 = vsub.f32 %v77, %v90
    %v92 = vadd.f32 %v75, %v91
    %vm93 = vcmask 7168
    %94 = vst.msk [vmem:[%s3] sm:$0xff] %vm93, %v92
    // Predicated region
    $region26: #{tpu_custom_call.1} parent=1 // pred_check
      _
    $region27: #{tpu_custom_call.1} parent=1 // pred_check_branch
      %96 = sbr.rel (0) target = $region29
    $region28: #{tpu_custom_call.1} parent=1 // pred_region
      _
    $region29: #{tpu_custom_call.1} parent=1 // pred_fallthru
      _
    // Predicated region
    $region30: #{tpu_custom_call.1} parent=1 // pred_check
      _
    $region31: #{tpu_custom_call.1} parent=1 // pred_check_branch
      %98 = sbr.rel (0) target = $region33
    $region32: #{tpu_custom_call.1} parent=1 // pred_region
      _
    $region33: #{tpu_custom_call.1} parent=1 // pred_fallthru
      _
    %99 = vsyncpa [#allocation3], 1
    %100 = vsyncpa [#allocation5], 1

</llo_original>
